<compile_context>
chip_gen: v7x
topology: tpu7x:2x2x1
jax: 0.10.0
libtpu: 0.0.40
codegen_flags: <defaults>
</compile_context>

<pallas_src>
import numpy as np
import jax
import jax.numpy as jnp
from jax.experimental import pallas as pl
from jax.experimental.pallas import tpu as pltpu

BN_EPS = 1e-5


def _round_up(n, m):
    return ((n + m - 1) // m) * m


# ----------------------------------------------------------------------------
# Entmax 1.5 (exact sort-based algorithm) -- parameter preprocessing in plain
# JAX; it only runs on the tiny (k, D) locality weight, not on the hot path.
# ----------------------------------------------------------------------------
def entmax15(z, axis=-1):
    z = z / 2.0
    z = z - jnp.max(z, axis=axis, keepdims=True)
    d = z.shape[axis]
    z_sorted = -jnp.sort(-z, axis=axis)                      # descending
    rho = jnp.arange(1, d + 1, dtype=z.dtype)
    mean = jnp.cumsum(z_sorted, axis=axis) / rho
    mean_sq = jnp.cumsum(z_sorted ** 2, axis=axis) / rho
    ss = rho * (mean_sq - mean ** 2)
    delta = (1.0 - ss) / rho
    delta_nz = jnp.clip(delta, 0.0, None)
    tau = mean - jnp.sqrt(delta_nz)
    support = jnp.sum((tau <= z_sorted).astype(jnp.int32), axis=axis, keepdims=True)
    tau_star = jnp.take_along_axis(tau, support - 1, axis=axis)
    return jnp.clip(z - tau_star, 0.0, None) ** 2


# ----------------------------------------------------------------------------
# Pallas kernel: one grid step per Ghost-BN chunk.
# Fused matmul -> batch-norm (chunk stats) -> GLU -> group-sum matmul.
# ----------------------------------------------------------------------------
def abstract_layer_kernel(x_ref, w_ref, gamma_ref, beta_ref, s_ref, out_ref):
    # One wide matmul covers all k groups; the entmax mask and the group
    # structure are pre-folded into the weight columns (gate slab | lin slab).
    y = jnp.dot(x_ref[...], w_ref[...],
                preferred_element_type=jnp.float32)          # (Bc, 2*Np) f32

    # Training-mode BatchNorm1d over this Ghost-BN chunk (biased variance).
    mean = jnp.mean(y, axis=0, keepdims=True)
    var = jnp.mean((y - mean) ** 2, axis=0, keepdims=True)
    yn = (y - mean) * jax.lax.rsqrt(var + BN_EPS) * gamma_ref[...] + beta_ref[...]

    # GLU gate: columns [0, Np) are gate channels, [Np, 2*Np) linear channels.
    # Np is a multiple of 128, so both slices are static and lane-aligned.
    n_pad = s_ref.shape[0]
    gate = jax.nn.sigmoid(yn[:, :n_pad])
    lin = yn[:, n_pad:]
    glu = jnp.maximum(gate * lin, 0.0)                       # relu(sigmoid(a)*b)

    # Group-sum over the k chunks as a second lane-dense MXU matmul with a
    # 0/1 reduction matrix (padded columns of glu are exactly 0 and S's rows
    # there are 0, so padding never leaks into the result).
    out_ref[...] = jnp.dot(glu, s_ref[...],
                           preferred_element_type=jnp.float32)


def abstract_layer_forward(x, ll_weight, fc_weight, fc_bias, bn_gamma, bn_beta,
                           k, base_output_dim, virtual_batch_size=512,
                           use_bf16=False):
    """x: (B, D) float32. Returns (B, base_output_dim) float32."""
    del fc_bias  # Cancels exactly under training-mode BN mean subtraction.
    B, D = x.shape
    O = base_output_dim

    # ---- parameter preprocessing (tiny, off the hot path, plain JAX) ----
    mask = entmax15(ll_weight, axis=-1)                       # (k, D)
    w = fc_weight.reshape(k, 2 * O, D) * mask[:, None, :]     # fold mask in
    # Split per-group gate/linear halves, transpose to canonical (D, N) layout.
    w_gate = jnp.transpose(w[:, :O, :], (2, 0, 1)).reshape(D, k * O)
    w_lin = jnp.transpose(w[:, O:, :], (2, 0, 1)).reshape(D, k * O)
    gamma = bn_gamma.reshape(k, 2 * O)
    beta = bn_beta.reshape(k, 2 * O)
    g_gate = gamma[:, :O].reshape(1, k * O)
    g_lin = gamma[:, O:].reshape(1, k * O)
    b_gate = beta[:, :O].reshape(1, k * O)
    b_lin = beta[:, O:].reshape(1, k * O)

    # ---- lane-dense padding: channel dims up to multiples of 128 lanes ----
    n_real = k * O
    n_pad = _round_up(max(n_real, 128), 128)
    o_pad = _round_up(max(O, 128), 128)

    def pad_cols(a, n):
        return jnp.pad(a, ((0, 0), (0, n - a.shape[-1])))

    w_big = jnp.concatenate([pad_cols(w_gate, n_pad),
                             pad_cols(w_lin, n_pad)], axis=1)      # (D, 2*Np)
    gamma_big = jnp.concatenate([pad_cols(g_gate, n_pad),
                                 pad_cols(g_lin, n_pad)], axis=1)  # (1, 2*Np)
    beta_big = jnp.concatenate([pad_cols(b_gate, n_pad),
                                pad_cols(b_lin, n_pad)], axis=1)   # (1, 2*Np)

    # 0/1 reduction matrix: out[:, o] = sum_g glu[:, g*O + o]
    s_np = np.zeros((n_pad, o_pad), dtype=np.float32)
    for g in range(k):
        s_np[g * O:(g + 1) * O, :O] = np.eye(O, dtype=np.float32)
    s_mat = jnp.asarray(s_np)

    # bf16 MXU inputs (v6e/v7x); accumulation and BN/GLU stay f32.
    compute_dtype = jnp.bfloat16 if use_bf16 else jnp.float32
    x_in = x.astype(compute_dtype)
    w_in = w_big.astype(compute_dtype)

    # ---- Ghost-BN chunking doubles as the batch tiling of the grid ----
    chunk = min(B, virtual_batch_size)
    if B % chunk != 0:
        # TODO(synk): torch.chunk(ceil(B/vbs)) produces near-equal (possibly
        # uneven) Ghost-BN chunks; only equal-size chunks are supported here.
        raise ValueError("batch must be a multiple of the Ghost-BN chunk size")
    num_chunks = B // chunk

    out = pl.pallas_call(
        abstract_layer_kernel,
        out_shape=jax.ShapeDtypeStruct((B, o_pad), jnp.float32),
        grid=(num_chunks,),
        in_specs=[
            pl.BlockSpec((chunk, D), lambda c: (c, 0)),            # x chunk
            pl.BlockSpec((D, 2 * n_pad), lambda c: (0, 0)),        # folded W
            pl.BlockSpec((1, 2 * n_pad), lambda c: (0, 0)),        # bn gamma
            pl.BlockSpec((1, 2 * n_pad), lambda c: (0, 0)),        # bn beta
            pl.BlockSpec((n_pad, o_pad), lambda c: (0, 0)),        # group-sum S
        ],
        out_specs=pl.BlockSpec((chunk, o_pad), lambda c: (c, 0)),  # lane-dense
        compiler_params=pltpu.CompilerParams(
            dimension_semantics=("parallel",)),                    # chunks indep.
    )(x_in, w_in, gamma_big, beta_big, s_mat)

    return out[:, :O]


# ----------------------------------------------------------------------------
# Pure-JAX reference (mirrors the PyTorch forward, bias included, GhostBN).
# ----------------------------------------------------------------------------
def reference_forward(x, ll_weight, fc_weight, fc_bias, bn_gamma, bn_beta,
                      k, base_output_dim, virtual_batch_size=512):
    B, D = x.shape
    O = base_output_dim
    mask = entmax15(ll_weight, axis=-1)                           # (k, D)
    masked = jnp.einsum('nd,bd->bnd', mask, x)                    # (B, k, D)
    w_g = fc_weight.reshape(k, 2 * O, D)
    y = jnp.einsum('bkd,kod->bko', masked, w_g) + fc_bias.reshape(k, 2 * O)
    y = y.reshape(B, k * 2 * O)
    n_chunks = int(np.ceil(B / virtual_batch_size))
    outs = []
    for yc in jnp.array_split(y, n_chunks, axis=0):
        mean = yc.mean(axis=0)
        var = ((yc - mean) ** 2).mean(axis=0)
        outs.append((yc - mean) / jnp.sqrt(var + BN_EPS) * bn_gamma + bn_beta)
    yn = jnp.concatenate(outs, axis=0).reshape(B, k, 2 * O)
    return jnp.sum(jax.nn.relu(jax.nn.sigmoid(yn[:, :, :O]) * yn[:, :, O:]),
                   axis=1)


if __name__ == "__main__":
    # Small shapes consistent with the module; VBS < B exercises the
    # multi-chunk Ghost-BN path (grid of 2 parallel chunks) in a single run.
    B = 16                # batch
    D = 16                # base_input_dim
    O = 8                 # base_output_dim
    K = 4                 # k (number of locality masks / conv groups)
    VBS = 8               # virtual_batch_size -> two Ghost-BN chunks of 8

    key = jax.random.PRNGKey(0)
    kx, kll, kw, kb = jax.random.split(key, 4)

    x = jax.random.normal(kx, (B, D), dtype=jnp.float32)

    # LearnableLocality.weight ~ torch.rand(k, D)  (uniform [0, 1))
    ll_weight = jax.random.uniform(kll, (K, D), dtype=jnp.float32)

    # Conv1d weight (2*K*O, D, 1), xavier_normal_ with DANet gain; bias uniform.
    fan_in, fan_out = D, 2 * K * O
    gain = np.sqrt((D * K + 2 * K * O) / np.sqrt(D * K))
    std = gain * np.sqrt(2.0 / (fan_in + fan_out))
    fc_weight = (std * jax.random.normal(kw, (2 * K * O, D), dtype=jnp.float32))
    bound = 1.0 / np.sqrt(fan_in)
    fc_bias = jax.random.uniform(kb, (2 * K * O,), dtype=jnp.float32,
                                 minval=-bound, maxval=bound)

    # BatchNorm1d affine params at init: gamma=1, beta=0.
    bn_gamma = jnp.ones((2 * K * O,), dtype=jnp.float32)
    bn_beta = jnp.zeros((2 * K * O,), dtype=jnp.float32)

    ref = reference_forward(x, ll_weight, fc_weight, fc_bias,
                            bn_gamma, bn_beta, K, O, virtual_batch_size=VBS)

    # f32 path (single kernel run): tight correctness check.
    out = abstract_layer_forward(x, ll_weight, fc_weight, fc_bias,
                                 bn_gamma, bn_beta, K, O,
                                 virtual_batch_size=VBS, use_bf16=False)
    out = jax.block_until_ready(out)
    np.testing.assert_allclose(np.asarray(out), np.asarray(ref),
                               rtol=1e-4, atol=1e-4)

    print("KERNEL_OK")
</pallas_src>

<mosaic_0001>
module attributes {stable_mosaic.version = 11 : i64} {
  func.func @abstract_layer_kernel(%arg0: i32, %arg1: memref<8x16xf32, #tpu.memory_space<vmem>>, %arg2: memref<16x256xf32, #tpu.memory_space<vmem>>, %arg3: memref<1x256xf32, #tpu.memory_space<vmem>>, %arg4: memref<1x256xf32, #tpu.memory_space<vmem>>, %arg5: memref<128x128xf32, #tpu.memory_space<vmem>>, %arg6: memref<8x128xf32, #tpu.memory_space<vmem>>) attributes {dimension_semantics = [#tpu.dimension_semantics<parallel>], iteration_bounds = array<i64: 2>, scalar_prefetch = 0 : i64, scratch_operands = 0 : i64, tpu.core_type = #tpu.core_type<tc>, window_params = [{transform_indices = @transform_0, window_bounds = array<i64: 8, 16>}, {pipeline_mode = #tpu.pipeline_mode<synchronous>, transform_indices = @transform_1, window_bounds = array<i64: 16, 256>}, {pipeline_mode = #tpu.pipeline_mode<synchronous>, transform_indices = @transform_2, window_bounds = array<i64: 1, 256>}, {pipeline_mode = #tpu.pipeline_mode<synchronous>, transform_indices = @transform_3, window_bounds = array<i64: 1, 256>}, {pipeline_mode = #tpu.pipeline_mode<synchronous>, transform_indices = @transform_4, window_bounds = array<i64: 128, 128>}, {transform_indices = @transform_5, window_bounds = array<i64: 8, 128>}]} {
    %c0 = arith.constant 0 : index
    %c0_0 = arith.constant 0 : index
    %0 = vector.load %arg1[%c0, %c0_0] : memref<8x16xf32, #tpu.memory_space<vmem>>, vector<8x16xf32>
    %c0_1 = arith.constant 0 : index
    %c0_2 = arith.constant 0 : index
    %1 = vector.load %arg2[%c0_1, %c0_2] : memref<16x256xf32, #tpu.memory_space<vmem>>, vector<16x256xf32>
    %cst = arith.constant dense<0.000000e+00> : vector<8x256xf32>
    %2 = tpu.matmul %0, %1, %cst {dimension_numbers = #tpu.dot_dimension_numbers<[1], [0], [0], [1], [0, 0, 1, 1], [], []>} : vector<8x16xf32>, vector<16x256xf32>, vector<8x256xf32> -> vector<8x256xf32>
    %cst_3 = arith.constant dense<0.000000e+00> : vector<256xf32>
    %3 = vector.multi_reduction <add>, %2, %cst_3 [0] : vector<8x256xf32> to vector<256xf32>
    %4 = vector.shape_cast %3 : vector<256xf32> to vector<1x256xf32>
    %cst_4 = arith.constant 8.000000e+00 : f32
    %5 = vector.broadcast %cst_4 : f32 to vector<1x256xf32>
    %6 = arith.divf %4, %5 : vector<1x256xf32>
    %7 = vector.broadcast %6 : vector<1x256xf32> to vector<8x256xf32>
    %8 = arith.subf %2, %7 : vector<8x256xf32>
    %9 = arith.mulf %8, %8 : vector<8x256xf32>
    %cst_5 = arith.constant dense<0.000000e+00> : vector<256xf32>
    %10 = vector.multi_reduction <add>, %9, %cst_5 [0] : vector<8x256xf32> to vector<256xf32>
    %11 = vector.shape_cast %10 : vector<256xf32> to vector<1x256xf32>
    %cst_6 = arith.constant 8.000000e+00 : f32
    %12 = vector.broadcast %cst_6 : f32 to vector<1x256xf32>
    %13 = arith.divf %11, %12 : vector<1x256xf32>
    %14 = vector.broadcast %6 : vector<1x256xf32> to vector<8x256xf32>
    %15 = arith.subf %2, %14 : vector<8x256xf32>
    %cst_7 = arith.constant 9.99999974E-6 : f32
    %16 = vector.broadcast %cst_7 : f32 to vector<1x256xf32>
    %17 = arith.addf %13, %16 : vector<1x256xf32>
    %18 = math.rsqrt %17 : vector<1x256xf32>
    %19 = vector.broadcast %18 : vector<1x256xf32> to vector<8x256xf32>
    %20 = arith.mulf %15, %19 : vector<8x256xf32>
    %c0_8 = arith.constant 0 : index
    %c0_9 = arith.constant 0 : index
    %21 = vector.load %arg3[%c0_8, %c0_9] : memref<1x256xf32, #tpu.memory_space<vmem>>, vector<1x256xf32>
    %22 = vector.broadcast %21 : vector<1x256xf32> to vector<8x256xf32>
    %23 = arith.mulf %20, %22 : vector<8x256xf32>
    %c0_10 = arith.constant 0 : index
    %c0_11 = arith.constant 0 : index
    %24 = vector.load %arg4[%c0_10, %c0_11] : memref<1x256xf32, #tpu.memory_space<vmem>>, vector<1x256xf32>
    %25 = vector.broadcast %24 : vector<1x256xf32> to vector<8x256xf32>
    %26 = arith.addf %23, %25 : vector<8x256xf32>
    %27 = vector.extract_strided_slice %26 {offsets = [0, 0], sizes = [8, 128], strides = [1, 1]} : vector<8x256xf32> to vector<8x128xf32>
    %28 = arith.negf %27 : vector<8x128xf32>
    %29 = math.exp %28 : vector<8x128xf32>
    %cst_12 = arith.constant 1.000000e+00 : f32
    %30 = vector.broadcast %cst_12 : f32 to vector<8x128xf32>
    %31 = arith.addf %30, %29 : vector<8x128xf32>
    %32 = arith.divf %30, %31 : vector<8x128xf32>
    %33 = vector.extract_strided_slice %26 {offsets = [0, 128], sizes = [8, 128], strides = [1, 1]} : vector<8x256xf32> to vector<8x128xf32>
    %34 = arith.mulf %32, %33 : vector<8x128xf32>
    %cst_13 = arith.constant 0.000000e+00 : f32
    %35 = vector.broadcast %cst_13 : f32 to vector<8x128xf32>
    %36 = arith.maximumf %34, %35 : vector<8x128xf32>
    %c0_14 = arith.constant 0 : index
    %c0_15 = arith.constant 0 : index
    %37 = vector.load %arg5[%c0_14, %c0_15] : memref<128x128xf32, #tpu.memory_space<vmem>>, vector<128x128xf32>
    %cst_16 = arith.constant dense<0.000000e+00> : vector<8x128xf32>
    %38 = tpu.matmul %36, %37, %cst_16 {dimension_numbers = #tpu.dot_dimension_numbers<[1], [0], [0], [1], [0, 0, 1, 1], [], []>} : vector<8x128xf32>, vector<128x128xf32>, vector<8x128xf32> -> vector<8x128xf32>
    %c0_17 = arith.constant 0 : index
    %c0_18 = arith.constant 0 : index
    %39 = vector.load %arg6[%c0_17, %c0_18] : memref<8x128xf32, #tpu.memory_space<vmem>>, vector<8x128xf32>
    tpu.vector_store %arg6[%c0_17, %c0_18], %38 {strides = array<i32>} : memref<8x128xf32, #tpu.memory_space<vmem>>, vector<8x128xf32>,
    return
  }
  func.func @transform_0(%arg0: i32) -> (i32, i32) {
    %c0_i32 = arith.constant 0 : i32
    %c0_i32_0 = arith.constant 0 : i32
    return %arg0, %c0_i32 : i32, i32
  }
  func.func @transform_1(%arg0: i32) -> (i32, i32) {
    %c0_i32 = arith.constant 0 : i32
    %c0_i32_0 = arith.constant 0 : i32
    %c0_i32_1 = arith.constant 0 : i32
    return %c0_i32, %c0_i32_0 : i32, i32
  }
  func.func @transform_2(%arg0: i32) -> (i32, i32) {
    %c0_i32 = arith.constant 0 : i32
    %c0_i32_0 = arith.constant 0 : i32
    %c0_i32_1 = arith.constant 0 : i32
    return %c0_i32, %c0_i32_0 : i32, i32
  }
  func.func @transform_3(%arg0: i32) -> (i32, i32) {
    %c0_i32 = arith.constant 0 : i32
    %c0_i32_0 = arith.constant 0 : i32
    %c0_i32_1 = arith.constant 0 : i32
    return %c0_i32, %c0_i32_0 : i32, i32
  }
  func.func @transform_4(%arg0: i32) -> (i32, i32) {
    %c0_i32 = arith.constant 0 : i32
    %c0_i32_0 = arith.constant 0 : i32
    %c0_i32_1 = arith.constant 0 : i32
    return %c0_i32, %c0_i32_0 : i32, i32
  }
  func.func @transform_5(%arg0: i32) -> (i32, i32) {
    %c0_i32 = arith.constant 0 : i32
    %c0_i32_0 = arith.constant 0 : i32
    return %arg0, %c0_i32 : i32, i32
  }
}

</mosaic_0001>

<llo_original>
// kernel: tpu_custom_call.1
$region0: #{tpu_custom_call.1}
  #allocation0 [shape = 'u32[]', space=smem, size = 0x4, offset = 0x4, fixed_abs, tag = 'smem constant byte address 0x4 - core index']
  #allocation1 [shape = 'u32[144,128]{1,0:T(1,128)}', space=vmem, size = 0x12000, scoped, tag = 'internal scratch']
  %s0 = inlined_call_operand.hbm [shape: f32[16,16], index: 0, kind: input, shape index: {}]
  %s1 = inlined_call_operand.hbm [shape: f32[16,256], index: 1, kind: input, shape index: {}]
  %s2 = inlined_call_operand.vmem [shape: f32[1,256], index: 2, kind: input, shape index: {}]
  %s3 = inlined_call_operand.vmem [shape: f32[1,256], index: 3, kind: input, shape index: {}]
  %s4 = inlined_call_operand.hbm [shape: f32[128,128], index: 4, kind: input, shape index: {}]
  %s5 = inlined_call_operand.hbm [shape: f32[16,128], index: 5, kind: output, shape index: {}]
  %s6 = sld [smem:[#allocation0]]
  $region65: #{tpu_custom_call.1} parent=0
    _
  %s8 = ssub.s32 1, %s6
  %s9 = scalar_select 0, %s8, %s6
  $region1: #{tpu_custom_call.1} parent=0
    #allocation2 [shape = 'u8[8192]{0}', space=vmem, size = 0x2000, scoped, tag = 'input window, operand 0']
    #allocation3 [shape = 's32[2]{0}', space=sflag, size = 0x8, scoped, tag = 'scoped memory for tpu_custom_call.1']
    #allocation4 [shape = 's32[2]{0}', space=sflag, size = 0x8, scoped, tag = 'scoped memory for tpu_custom_call.1']
    #allocation5 [shape = 'u8[16384]{0}', space=vmem, size = 0x4000, scoped, tag = 'input window, operand 1, single buffered']
    #allocation6 [shape = 's32[1]{0}', space=sflag, size = 0x4, scoped, tag = 'scoped memory for tpu_custom_call.1']
    #allocation7 [shape = 'u8[65536]{0}', space=vmem, size = 0x10000, scoped, tag = 'input window, operand 4, single buffered']
    #allocation8 [shape = 'u8[8192]{0}', space=vmem, size = 0x2000, scoped, tag = 'output window, operand 0']
    %10 = vsyncpa [#allocation3], 0
    %s11 = scalar_lea.sflag [#allocation3], 1
    %12 = vsyncpa %s11, 0
    %13 = vsyncpa [#allocation6], 0
    %14 = vsyncpa [#allocation4], 0
    %s15 = scalar_lea.sflag [#allocation4], 1
    %16 = vsyncpa %s15, 0
    loop: start=0, step=1, limit=4
    $region2: #{tpu_custom_call.1} parent=1 // loop_pre_header
      _
    $region3: #{tpu_custom_call.1} parent=1 // loop_header
      %s18 = sphi 0, %s22
      %p19 = scmp.ge.s32.totalorder %s18, 4
      %s28 = sphi 0, %s30
      %s31 = sphi 0, %s28
      %s32 = sphi 0, %s31
      %s48 = sphi 0, %s32
      %s52 = sphi 0, %s52
      %s54 = sphi 0, %s52
      %s55 = sphi 0, %s54
      %s69 = sphi 0, %s55
      %s73 = sphi 0, %s73
      %s75 = sphi 0, %s73
      %s76 = sphi 0, %s75
      %s90 = sphi 0, %s76
      %s94 = sphi 0, %s94
      %s96 = sphi 0, %s94
      %s97 = sphi 0, %s96
      %s111 = sphi 0, %s97
      %s115 = sphi 0, %s115
      %s117 = sphi 0, %s115
      %s118 = sphi 0, %s117
      %s132 = sphi 0, %s118
      %s138 = sphi 0, %s140
      %s141 = sphi 0, %s138
      %s142 = sphi 0, %s141
      %s158 = sphi 0, %s142
    $region4: #{tpu_custom_call.1} parent=1 // loop_header_branch
      %21 = sbr.rel (%p19) target = $region8
    $region5: #{tpu_custom_call.1} parent=1 // loop_body
      %s23 = ssub.s32 %s18, 1
      %s24 = ssub.s32 %s18, 2
      %s25 = sadd.s32 %s18, 1
      %s26 = ssub.s32 %s18, %s25
      %p27 = scmp.eq.s32.totalorder %s26, 0
      %s29 = sadd.s32 %s28, 1
      %s30 = scalar_select %p27, %s28, %s29
      %p33 = pneg %p27
      %p34 = scmp.eq.s32.totalorder %s18, 1
      %p35 = por %p33, %p34
      %p36 = scmp.ne.s32.totalorder %s28, %s31
      %p37 = scmp.eq.s32.totalorder %s18, 0
      %p38 = por %p36, %p37
      %p39 = scmp.ne.s32.totalorder %s28, %s31
      %p40 = scmp.eq.s32.totalorder %s23, 1
      %p41 = por %p39, %p40
      %p42 = scmp.ne.s32.totalorder %s31, %s32
      %p43 = scmp.eq.s32.totalorder %s23, 0
      %p44 = por %p42, %p43
      %p45 = scmp.ne.s32.totalorder %s31, %s32
      %p46 = scmp.eq.s32.totalorder %s24, 1
      %p47 = por %p45, %p46
      %p49 = scmp.ne.s32.totalorder %s32, %s48
      %p50 = scmp.eq.s32.totalorder %s24, 0
      %p51 = por %p49, %p50
      %s53 = sadd.s32 %s52, 1
      %p56 = scmp.eq.s32.totalorder %s18, 1
      %p57 = scmp.ne.s32.totalorder %s52, %s54
      %p58 = scmp.eq.s32.totalorder %s18, 0
      %p59 = por %p57, %p58
      %p60 = scmp.ne.s32.totalorder %s52, %s54
      %p61 = scmp.eq.s32.totalorder %s23, 1
      %p62 = por %p60, %p61
      %p63 = scmp.ne.s32.totalorder %s54, %s55
      %p64 = scmp.eq.s32.totalorder %s23, 0
      %p65 = por %p63, %p64
      %p66 = scmp.ne.s32.totalorder %s54, %s55
      %p67 = scmp.eq.s32.totalorder %s24, 1
      %p68 = por %p66, %p67
      %p70 = scmp.ne.s32.totalorder %s55, %s69
      %p71 = scmp.eq.s32.totalorder %s24, 0
      %p72 = por %p70, %p71
      %s74 = sadd.s32 %s73, 1
      %p77 = scmp.eq.s32.totalorder %s18, 1
      %p78 = scmp.ne.s32.totalorder %s73, %s75
      %p79 = scmp.eq.s32.totalorder %s18, 0
      %p80 = por %p78, %p79
      %p81 = scmp.ne.s32.totalorder %s73, %s75
      %p82 = scmp.eq.s32.totalorder %s23, 1
      %p83 = por %p81, %p82
      %p84 = scmp.ne.s32.totalorder %s75, %s76
      %p85 = scmp.eq.s32.totalorder %s23, 0
      %p86 = por %p84, %p85
      %p87 = scmp.ne.s32.totalorder %s75, %s76
      %p88 = scmp.eq.s32.totalorder %s24, 1
      %p89 = por %p87, %p88
      %p91 = scmp.ne.s32.totalorder %s76, %s90
      %p92 = scmp.eq.s32.totalorder %s24, 0
      %p93 = por %p91, %p92
      %s95 = sadd.s32 %s94, 1
      %p98 = scmp.eq.s32.totalorder %s18, 1
      %p99 = scmp.ne.s32.totalorder %s94, %s96
      %p100 = scmp.eq.s32.totalorder %s18, 0
      %p101 = por %p99, %p100
      %p102 = scmp.ne.s32.totalorder %s94, %s96
      %p103 = scmp.eq.s32.totalorder %s23, 1
      %p104 = por %p102, %p103
      %p105 = scmp.ne.s32.totalorder %s96, %s97
      %p106 = scmp.eq.s32.totalorder %s23, 0
      %p107 = por %p105, %p106
      %p108 = scmp.ne.s32.totalorder %s96, %s97
      %p109 = scmp.eq.s32.totalorder %s24, 1
      %p110 = por %p108, %p109
      %p112 = scmp.ne.s32.totalorder %s97, %s111
      %p113 = scmp.eq.s32.totalorder %s24, 0
      %p114 = por %p112, %p113
      %s116 = sadd.s32 %s115, 1
      %p119 = scmp.eq.s32.totalorder %s18, 1
      %p120 = scmp.ne.s32.totalorder %s115, %s117
      %p121 = scmp.eq.s32.totalorder %s18, 0
      %p122 = por %p120, %p121
      %p123 = scmp.ne.s32.totalorder %s115, %s117
      %p124 = scmp.eq.s32.totalorder %s23, 1
      %p125 = por %p123, %p124
      %p126 = scmp.ne.s32.totalorder %s117, %s118
      %p127 = scmp.eq.s32.totalorder %s23, 0
      %p128 = por %p126, %p127
      %p129 = scmp.ne.s32.totalorder %s117, %s118
      %p130 = scmp.eq.s32.totalorder %s24, 1
      %p131 = por %p129, %p130
      %p133 = scmp.ne.s32.totalorder %s118, %s132
      %p134 = scmp.eq.s32.totalorder %s24, 0
      %p135 = por %p133, %p134
      %s136 = ssub.s32 %s18, %s25
      %p137 = scmp.eq.s32.totalorder %s136, 0
      %s139 = sadd.s32 %s138, 1
      %s140 = scalar_select %p137, %s138, %s139
      %p143 = pneg %p137
      %p144 = scmp.eq.s32.totalorder %s18, 1
      %p145 = por %p143, %p144
      %p146 = scmp.ne.s32.totalorder %s138, %s141
      %p147 = scmp.eq.s32.totalorder %s18, 0
      %p148 = por %p146, %p147
      %p149 = scmp.ne.s32.totalorder %s138, %s141
      %p150 = scmp.eq.s32.totalorder %s23, 1
      %p151 = por %p149, %p150
      %p152 = scmp.ne.s32.totalorder %s141, %s142
      %p153 = scmp.eq.s32.totalorder %s23, 0
      %p154 = por %p152, %p153
      %p155 = scmp.ne.s32.totalorder %s141, %s142
      %p156 = scmp.eq.s32.totalorder %s24, 1
      %p157 = por %p155, %p156
      %p159 = scmp.ne.s32.totalorder %s142, %s158
      %p160 = scmp.eq.s32.totalorder %s24, 0
      %p161 = por %p159, %p160
      %p162 = scmp.le.s32.totalorder 1, %s18
      %p163 = scmp.lt.s32.totalorder %s18, 3
      %p164 = pnand %p162, %p163
      %p165 = pneg %p164
      // Predicated region
      $region9: #{tpu_custom_call.1} parent=5 // pred_check
        _
      $region10: #{tpu_custom_call.1} parent=5 // pred_check_branch
        %167 = sbr.rel (%p164) target = $region12
      $region11: #{tpu_custom_call.1} parent=5 // pred_region
        %s168 = ssub.s32 %s18, 1
        // Predicated region
        $region13: #{tpu_custom_call.1} parent=11 // pred_check
          %p169 = pneg %p65
        $region14: #{tpu_custom_call.1} parent=11 // pred_check_branch
          %171 = sbr.rel (%p169) target = $region16
        $region15: #{tpu_custom_call.1} parent=11 // pred_region
          %s173 = ssub.s32 512, 512
          %174 = vsyncadd [#allocation6], %s173
          %s175 = sshll.u32 [#allocation5], 4
          %s176 = int_to_ptr.vmem [resolvable:$true] %s175
          %181 = dma.hbm_to_vmem [thread:$0]  %s1, 512, %s176, [#allocation6], 256, 256, 16
        $region16: #{tpu_custom_call.1} parent=11 // pred_fallthru
          _
        // Predicated region
        $region17: #{tpu_custom_call.1} parent=11 // pred_check
          %p182 = pneg %p86
        $region18: #{tpu_custom_call.1} parent=11 // pred_check_branch
          %184 = sbr.rel (%p182) target = $region20
        $region19: #{tpu_custom_call.1} parent=11 // pred_region
          _
        $region20: #{tpu_custom_call.1} parent=11 // pred_fallthru
          _
        // Predicated region
        $region21: #{tpu_custom_call.1} parent=11 // pred_check
          %p185 = pneg %p107
        $region22: #{tpu_custom_call.1} parent=11 // pred_check_branch
          %187 = sbr.rel (%p185) target = $region24
        $region23: #{tpu_custom_call.1} parent=11 // pred_region
          _
        $region24: #{tpu_custom_call.1} parent=11 // pred_fallthru
          _
        // Predicated region
        $region25: #{tpu_custom_call.1} parent=11 // pred_check
          %p188 = pneg %p128
        $region26: #{tpu_custom_call.1} parent=11 // pred_check_branch
          %190 = sbr.rel (%p188) target = $region28
        $region27: #{tpu_custom_call.1} parent=11 // pred_region
          %s192 = ssub.s32 2048, 2048
          %193 = vsyncadd [#allocation6], %s192
          %s194 = sshll.u32 [#allocation7], 4
          %s195 = int_to_ptr.vmem [resolvable:$true] %s194
          %200 = dma.hbm_to_vmem [thread:$0]  %s4, 2048, %s195, [#allocation6], 128, 128, 8
        $region28: #{tpu_custom_call.1} parent=11 // pred_fallthru
          _
      $region12: #{tpu_custom_call.1} parent=5 // pred_fallthru
        _
      %p201 = scmp.lt.s32.totalorder %s18, 2
      // Predicated region
      $region29: #{tpu_custom_call.1} parent=5 // pred_check
        %p202 = pneg %p201
      $region30: #{tpu_custom_call.1} parent=5 // pred_check_branch
        %204 = sbr.rel (%p202) target = $region32
      $region31: #{tpu_custom_call.1} parent=5 // pred_region
        // Predicated region
        $region33: #{tpu_custom_call.1} parent=31 // pred_check
          %p205 = pneg %p38
        $region34: #{tpu_custom_call.1} parent=31 // pred_check_branch
          %207 = sbr.rel (%p205) target = $region36
        $region35: #{tpu_custom_call.1} parent=31 // pred_region
          %s208 = sand.u32 %s28, 1
          %s209 = scalar_lea.sflag [#allocation3], %s208
          %s210 = sand.u32 %s28, 1
          %s211 = smul.addr %s210, 8
          %s212 = scalar_lea.vmem [#allocation2], %s211
          %s214 = ssub.s32 128, 128
          %215 = vsyncadd %s209, %s214
          %s216 = smul.addr %s18, 128
          %s217 = scalar_lea.hbm %s0, %s216
          %s219 = sshll.u32 %s212, 4
          %s220 = int_to_ptr.vmem [resolvable:$true] %s219
          %222 = dma.hbm_to_vmem [thread:$0]  %s217, 128, %s220, %s209
        $region36: #{tpu_custom_call.1} parent=31 // pred_fallthru
          _
      $region32: #{tpu_custom_call.1} parent=5 // pred_fallthru
        _
      %p223 = scmp.le.s32.totalorder 1, %s18
      %p224 = scmp.lt.s32.totalorder %s18, 3
      %p225 = pnand %p223, %p224
      %p226 = pneg %p225
      // Predicated region
      $region37: #{tpu_custom_call.1} parent=5 // pred_check
        _
      $region38: #{tpu_custom_call.1} parent=5 // pred_check_branch
        %228 = sbr.rel (%p225) target = $region40
      $region39: #{tpu_custom_call.1} parent=5 // pred_region
        %s229 = ssub.s32 %s18, 1
        %s230 = sand.u32 %s31, 1
        %s231 = scalar_lea.sflag [#allocation3], %s230
        %s232 = sand.u32 %s31, 1
        %s233 = smul.addr %s232, 8
        %s234 = scalar_lea.vmem [#allocation2], %s233
        // Predicated region
        $region41: #{tpu_custom_call.1} parent=39 // pred_check
          %p235 = pneg %p44
        $region42: #{tpu_custom_call.1} parent=39 // pred_check_branch
          %237 = sbr.rel (%p235) target = $region44
        $region43: #{tpu_custom_call.1} parent=39 // pred_region
          %238 = dma.done %s231, 128
        $region44: #{tpu_custom_call.1} parent=39 // pred_fallthru
          _
        // Predicated region
        $region45: #{tpu_custom_call.1} parent=39 // pred_check
          %p239 = pneg %p65
        $region46: #{tpu_custom_call.1} parent=39 // pred_check_branch
          %241 = sbr.rel (%p239) target = $region48
        $region47: #{tpu_custom_call.1} parent=39 // pred_region
          %242 = dma.done [#allocation6], 512
        $region48: #{tpu_custom_call.1} parent=39 // pred_fallthru
          _
        // Predicated region
        $region49: #{tpu_custom_call.1} parent=39 // pred_check
          %p243 = pneg %p128
        $region50: #{tpu_custom_call.1} parent=39 // pred_check_branch
          %245 = sbr.rel (%p243) target = $region52
        $region51: #{tpu_custom_call.1} parent=39 // pred_region
          %246 = dma.done [#allocation6], 2048
        $region52: #{tpu_custom_call.1} parent=39 // pred_fallthru
          _
        %s247 = sand.u32 %s31, 1
        %s248 = scalar_lea.sflag [#allocation3], %s247
        %s249 = sand.u32 %s31, 1
        %s250 = smul.addr %s249, 8
        %s251 = scalar_lea.vmem [#allocation2], %s250
        %p252 = pneg %p44
        %p253 = pneg %p41
        %p254 = pneg %p65
        %p255 = pneg %p62
        %p256 = pneg %p86
        %p257 = pneg %p83
        %p258 = pneg %p107
        %p259 = pneg %p104
        %p260 = pneg %p128
        %p261 = pneg %p125
        %p262 = pneg %p154
        %p263 = pneg %p151
        %s264 = sand.u32 %s141, 1
        %s265 = scalar_lea.sflag [#allocation4], %s264
        %s266 = sand.u32 %s141, 1
        %s267 = smul.addr %s266, 8
        %s268 = scalar_lea.vmem [#allocation8], %s267
        %v269 = vld [vmem:[%s234] sm:$0xff]
        %v270 = vld [vmem:[#allocation5] sm:$0xff]
        %v271 = vld [vmem:[#allocation5 + $0x8] sm:$0xff]
        %v272 = vld [vmem:[#allocation5 + $0x10] sm:$0xff]
        %v273 = vld [vmem:[#allocation5 + $0x18] sm:$0xff]
        %vm274 = vcmask 130048
        %v276 = vsel %vm274, %v269, 0
        %278 = vmatprep.subr.mxu0 %v271
        %279 = vmatpush1.msra.mxu0 %v270
        %280 = vmatprep.subr.mxu0 %v273
        %281 = vmatpush1.msra.mxu0 %v272
        %282 = vmatprep.subr.mxu0 0.0
        %283 = vmatpush1.msra.mxu0 0.0
        %284 = vmatprep.subr.mxu0 0.0
        %285 = vmatpush1.msra.mxu0 0.0
        %286 = vmatprep.subr.mxu0 0.0
        %287 = vmatpush1.msra.mxu0 0.0
        %288 = vmatprep.subr.mxu0 0.0
        %289 = vmatpush1.msra.mxu0 0.0
        %290 = vmatprep.subr.mxu0 0.0
        %291 = vmatpush1.msra.mxu0 0.0
        %292 = vmatprep.subr.mxu0 0.0
        %293 = vmatpush1.msra.mxu0 0.0
        %294 = vmatprep.subr.mxu0 0.0
        %295 = vmatpush1.msra.mxu0 0.0
        %296 = vmatprep.subr.mxu0 0.0
        %297 = vmatpush1.msra.mxu0 0.0
        %298 = vmatprep.subr.mxu0 0.0
        %299 = vmatpush1.msra.mxu0 0.0
        %300 = vmatprep.subr.mxu0 0.0
        %301 = vmatpush1.msra.mxu0 0.0
        %302 = vmatprep.subr.mxu0 0.0
        %303 = vmatpush1.msra.mxu0 0.0
        %304 = vmatprep.subr.mxu0 0.0
        %305 = vmatpush1.msra.mxu0 0.0
        %306 = vmatprep.subr.mxu0 0.0
        %307 = vmatpush1.msra.mxu0 0.0
        %308 = vmatprep.subr.mxu0 0.0
        %309 = vmatpush1.msra.mxu0 0.0
        %310 = vmatprep.subr.mxu0 0.0
        %311 = vmatpush1.msra.mxu0 0.0
        %312 = vmatprep.subr.mxu0 0.0
        %313 = vmatpush1.msra.mxu0 0.0
        %314 = vmatprep.subr.mxu0 0.0
        %315 = vmatpush1.msra.mxu0 0.0
        %316 = vmatprep.subr.mxu0 0.0
        %317 = vmatpush1.msra.mxu0 0.0
        %318 = vmatprep.subr.mxu0 0.0
        %319 = vmatpush1.msra.mxu0 0.0
        %320 = vmatprep.subr.mxu0 0.0
        %321 = vmatpush1.msra.mxu0 0.0
        %322 = vmatprep.subr.mxu0 0.0
        %323 = vmatpush1.msra.mxu0 0.0
        %324 = vmatprep.subr.mxu0 0.0
        %325 = vmatpush1.msra.mxu0 0.0
        %326 = vmatprep.subr.mxu0 0.0
        %327 = vmatpush1.msra.mxu0 0.0
        %328 = vmatprep.subr.mxu0 0.0
        %329 = vmatpush1.msra.mxu0 0.0
        %330 = vmatprep.subr.mxu0 0.0
        %331 = vmatpush1.msra.mxu0 0.0
        %332 = vmatprep.subr.mxu0 0.0
        %333 = vmatpush1.msra.mxu0 0.0
        %334 = vmatprep.subr.mxu0 0.0
        %335 = vmatpush1.msra.mxu0 0.0
        %336 = vmatprep.subr.mxu0 0.0
        %337 = vmatpush1.msra.mxu0 0.0
        %338 = vmatprep.subr.mxu0 0.0
        %339 = vmatpush1.msra.mxu0 0.0
        %340 = vmatprep.subr.mxu0 0.0
        %341 = vmatpush1.msra.mxu0 0.0
        %342 = vmatprep.mubr.f32.mxu0 0.0
        %343 = vmatmul.mubr.f32.gmra.mrb[0].mxu0 %v276
        %v344 = vpop.f32.mrb[0].mxu0
        %v345 = vadd.f32 0.0, %v344
        %v346 = vpop.f32.mrb[0].mxu0
        %v347 = vadd.f32 0.0, %v346
        %348 = vdwg.mxu0
        %v349 = vrot.slane %v345, 4
        %v350 = vadd.f32 %v345, %v349
        %v351 = vrot.slane %v350, 2
        %v352 = vadd.f32 %v350, %v351
        %v353 = vrot.slane %v352, 1
        %v354 = vadd.f32 %v352, %v353
        %v355 = vrot.slane %v347, 4
        %v356 = vadd.f32 %v347, %v355
        %v357 = vrot.slane %v356, 2
        %v358 = vadd.f32 %v356, %v357
        %v359 = vrot.slane %v358, 1
        %v360 = vadd.f32 %v358, %v359
        %v361 = vrcp.pop 8.0
        %v362 = vmul.f32 %v354, %v361
        %v363 = vmul.f32 %v360, %v361
        %v364 = vsub.f32 %v345, %v362
        %v365 = vsub.f32 %v347, %v363
        %v366 = vmul.f32 %v364, %v364
        %v367 = vmul.f32 %v365, %v365
        %v368 = vrot.slane %v366, 4
        %v369 = vadd.f32 %v366, %v368
        %v370 = vrot.slane %v369, 2
        %v371 = vadd.f32 %v369, %v370
        %v372 = vrot.slane %v371, 1
        %v373 = vadd.f32 %v371, %v372
        %v374 = vrot.slane %v367, 4
        %v375 = vadd.f32 %v367, %v374
        %v376 = vrot.slane %v375, 2
        %v377 = vadd.f32 %v375, %v376
        %v378 = vrot.slane %v377, 1
        %v379 = vadd.f32 %v377, %v378
        %v380 = vmul.f32 %v373, %v361
        %v381 = vmul.f32 %v379, %v361
        %v382 = vadd.f32 %v380, 1e-05
        %v383 = vadd.f32 %v381, 1e-05
        %v384 = vrsqrt.pop %v382
        %v385 = vrsqrt.pop %v383
        %v386 = vmul.f32 %v364, %v384
        %v387 = vmul.f32 %v365, %v385
        %v388 = vld [vmem:[%s2] sm:$0x3]
        %v390 = vlaneseq
        %v391 = vshrl.u32 %v390, 7
        %v392 = vsub.s32 0, %v391
        %v393 = vrot.slane %v388, %v392
        %v394 = vlaneseq
        %v395 = vshrl.u32 %v394, 7
        %v396 = vsub.s32 1, %v395
        %v397 = vrot.slane %v388, %v396
        %v400 = vmul.f32 %v386, %v393
        %v401 = vmul.f32 %v387, %v397
        %v402 = vld [vmem:[%s3] sm:$0x3]
        %v404 = vlaneseq
        %v405 = vshrl.u32 %v404, 7
        %v406 = vsub.s32 0, %v405
        %v407 = vrot.slane %v402, %v406
        %v408 = vlaneseq
        %v409 = vshrl.u32 %v408, 7
        %v410 = vsub.s32 1, %v409
        %v411 = vrot.slane %v402, %v410
        %v414 = vadd.f32 %v400, %v407
        %v415 = vadd.f32 %v401, %v411
        %v416 = vxor.u32 %v414, 2147483648
        %v417 = vmul.f32 %v416, 1.442695
        %v418 = vpow.pop %v417
        %v419 = vadd.f32 %v418, 1.0
        %v420 = vrcp.pop %v419
        %v421 = vmul.f32 1.0, %v420
        %v422 = vmul.f32 %v421, %v415
        %v423 = vmax.f32 %v422, 0.0
        %v424 = vld [vmem:[#allocation7] sm:$0xff]
        %v425 = vld [vmem:[#allocation7 + $0x8] sm:$0xff]
        %v426 = vld [vmem:[#allocation7 + $0x10] sm:$0xff]
        %v427 = vld [vmem:[#allocation7 + $0x18] sm:$0xff]
        %v428 = vld [vmem:[#allocation7 + $0x20] sm:$0xff]
        %v429 = vld [vmem:[#allocation7 + $0x28] sm:$0xff]
        %v430 = vld [vmem:[#allocation7 + $0x30] sm:$0xff]
        %v431 = vld [vmem:[#allocation7 + $0x38] sm:$0xff]
        %v432 = vld [vmem:[#allocation7 + $0x40] sm:$0xff]
        %v433 = vld [vmem:[#allocation7 + $0x48] sm:$0xff]
        %v434 = vld [vmem:[#allocation7 + $0x50] sm:$0xff]
        %v435 = vld [vmem:[#allocation7 + $0x58] sm:$0xff]
        %v436 = vld [vmem:[#allocation7 + $0x60] sm:$0xff]
        %v437 = vld [vmem:[#allocation7 + $0x68] sm:$0xff]
        %v438 = vld [vmem:[#allocation7 + $0x70] sm:$0xff]
        %v439 = vld [vmem:[#allocation7 + $0x78] sm:$0xff]
        %440 = vmatprep.subr.mxu0 0.0
        %441 = vmatpush1.msra.mxu0 %v424
        %442 = vmatprep.subr.mxu0 0.0
        %443 = vmatpush1.msra.mxu0 %v425
        %444 = vmatprep.subr.mxu0 0.0
        %445 = vmatpush1.msra.mxu0 %v426
        %446 = vmatprep.subr.mxu0 0.0
        %447 = vmatpush1.msra.mxu0 %v427
        %448 = vmatprep.subr.mxu0 0.0
        %449 = vmatpush1.msra.mxu0 %v428
        %450 = vmatprep.subr.mxu0 0.0
        %451 = vmatpush1.msra.mxu0 %v429
        %452 = vmatprep.subr.mxu0 0.0
        %453 = vmatpush1.msra.mxu0 %v430
        %454 = vmatprep.subr.mxu0 0.0
        %455 = vmatpush1.msra.mxu0 %v431
        %456 = vmatprep.subr.mxu0 0.0
        %457 = vmatpush1.msra.mxu0 %v432
        %458 = vmatprep.subr.mxu0 0.0
        %459 = vmatpush1.msra.mxu0 %v433
        %460 = vmatprep.subr.mxu0 0.0
        %461 = vmatpush1.msra.mxu0 %v434
        %462 = vmatprep.subr.mxu0 0.0
        %463 = vmatpush1.msra.mxu0 %v435
        %464 = vmatprep.subr.mxu0 0.0
        %465 = vmatpush1.msra.mxu0 %v436
        %466 = vmatprep.subr.mxu0 0.0
        %467 = vmatpush1.msra.mxu0 %v437
        %468 = vmatprep.subr.mxu0 0.0
        %469 = vmatpush1.msra.mxu0 %v438
        %470 = vmatprep.subr.mxu0 0.0
        %471 = vmatpush1.msra.mxu0 %v439
        %472 = vmatprep.subr.mxu0 0.0
        %473 = vmatpush1.msra.mxu0 0.0
        %474 = vmatprep.subr.mxu0 0.0
        %475 = vmatpush1.msra.mxu0 0.0
        %476 = vmatprep.subr.mxu0 0.0
        %477 = vmatpush1.msra.mxu0 0.0
        %478 = vmatprep.subr.mxu0 0.0
        %479 = vmatpush1.msra.mxu0 0.0
        %480 = vmatprep.subr.mxu0 0.0
        %481 = vmatpush1.msra.mxu0 0.0
        %482 = vmatprep.subr.mxu0 0.0
        %483 = vmatpush1.msra.mxu0 0.0
        %484 = vmatprep.subr.mxu0 0.0
        %485 = vmatpush1.msra.mxu0 0.0
        %486 = vmatprep.subr.mxu0 0.0
        %487 = vmatpush1.msra.mxu0 0.0
        %488 = vmatprep.subr.mxu0 0.0
        %489 = vmatpush1.msra.mxu0 0.0
        %490 = vmatprep.subr.mxu0 0.0
        %491 = vmatpush1.msra.mxu0 0.0
        %492 = vmatprep.subr.mxu0 0.0
        %493 = vmatpush1.msra.mxu0 0.0
        %494 = vmatprep.subr.mxu0 0.0
        %495 = vmatpush1.msra.mxu0 0.0
        %496 = vmatprep.subr.mxu0 0.0
        %497 = vmatpush1.msra.mxu0 0.0
        %498 = vmatprep.subr.mxu0 0.0
        %499 = vmatpush1.msra.mxu0 0.0
        %500 = vmatprep.subr.mxu0 0.0
        %501 = vmatpush1.msra.mxu0 0.0
        %502 = vmatprep.subr.mxu0 0.0
        %503 = vmatpush1.msra.mxu0 0.0
        %504 = vmatprep.mubr.f32.mxu0 0.0
        %505 = vmatmul.mubr.f32.gmra.mrb[0].mxu0 %v423
        %v506 = vpop.f32.mrb[0].mxu0
        %v507 = vadd.f32 0.0, %v506
        %v508 = vpop.f32.mrb[0].mxu0
        %509 = vdwg.mxu0
        %510 = vst [vmem:[%s268] sm:$0xff] %v507
        %s511 = sand.u32 %s141, 1
        %s512 = scalar_lea.sflag [#allocation4], %s511
        %s513 = sand.u32 %s141, 1
        %s514 = smul.addr %s513, 8
        %s515 = scalar_lea.vmem [#allocation8], %s514
        // Predicated region
        $region53: #{tpu_custom_call.1} parent=39 // pred_check
          %p516 = pneg %p151
        $region54: #{tpu_custom_call.1} parent=39 // pred_check_branch
          %518 = sbr.rel (%p516) target = $region56
        $region55: #{tpu_custom_call.1} parent=39 // pred_region
          %s520 = ssub.s32 128, 128
          %521 = vsyncadd %s512, %s520
          %s522 = smul.addr %s23, 128
          %s523 = scalar_lea.hbm %s5, %s522
          %s525 = sshll.u32 %s515, 4
          %s526 = int_to_ptr.vmem [resolvable:$true] %s525
          %528 = dma.vmem_to_hbm [thread:$0]  %s526, 128, %s523, %s512
        $region56: #{tpu_custom_call.1} parent=39 // pred_fallthru
          _
      $region40: #{tpu_custom_call.1} parent=5 // pred_fallthru
        _
      %p529 = scmp.le.s32.totalorder 2, %s18
      // Predicated region
      $region57: #{tpu_custom_call.1} parent=5 // pred_check
        %p530 = pneg %p529
      $region58: #{tpu_custom_call.1} parent=5 // pred_check_branch
        %532 = sbr.rel (%p530) target = $region60
      $region59: #{tpu_custom_call.1} parent=5 // pred_region
        %s533 = ssub.s32 %s18, 2
        // Predicated region
        $region61: #{tpu_custom_call.1} parent=59 // pred_check
          %p534 = pneg %p157
        $region62: #{tpu_custom_call.1} parent=59 // pred_check_branch
          %536 = sbr.rel (%p534) target = $region64
        $region63: #{tpu_custom_call.1} parent=59 // pred_region
          %s537 = sand.u32 %s142, 1
          %s538 = scalar_lea.sflag [#allocation4], %s537
          %s539 = sand.u32 %s142, 1
          %s540 = smul.addr %s539, 8
          %s541 = scalar_lea.vmem [#allocation8], %s540
          %542 = dma.done %s538, 128
        $region64: #{tpu_custom_call.1} parent=59 // pred_fallthru
          _
      $region60: #{tpu_custom_call.1} parent=5 // pred_fallthru
        _
    $region6: #{tpu_custom_call.1} parent=1 // loop_footer
      %s22 = sadd.s32 1, %s18
    $region7: #{tpu_custom_call.1} parent=1 // loop_footer_branch
      %17 = sbr.rel target = $region3
    $region8: #{tpu_custom_call.1} parent=1 // loop_exit
      _
    %543 = vsyncpa [#allocation3], 1
    %s544 = scalar_lea.sflag [#allocation3], 1
    %545 = vsyncpa %s544, 1
    %546 = vsyncpa [#allocation6], 1
    %547 = vsyncpa [#allocation4], 1
    %s548 = scalar_lea.sflag [#allocation4], 1
    %549 = vsyncpa %s548, 1

</llo_original>
